<compile_context>
chip_gen: v6e
topology: v6e:2x2x1
jax: 0.10.0
libtpu: 0.0.40
codegen_flags: <defaults>
</compile_context>

<pallas_src>
import functools

import jax
import jax.numpy as jnp
from jax import lax
from jax.experimental import pallas as pl
from jax.experimental.pallas import tpu as pltpu


_IN_BLOCK_BUDGET = 4 << 20    # ~4 MiB input block per grid step (HBM-roofline regime)
_MAX_CHAN_UNROLL = 32         # cap on the static per-step channel unroll (trace size)
_MIN_PARALLEL_STEPS = 4       # keep both v7x TCs busy + keep the DMA pipeline filled


def _cdiv(a, b):
    return -(-a // b)


def _round_up(n, m):
    return _cdiv(n, m) * m


def _sublane(dtype):
    """Native sublane tile (rows): f32 -> 8, bf16/f16 -> 16, int8/fp8 -> 32."""
    return {1: 32, 2: 16}.get(jnp.dtype(dtype).itemsize, 8)


def _pick_tiles(B, C, H, W_in, dtype):
    """Pick (channel_tile, row_tile, sublane) given the in-kernel width W_in."""
    itemsize = jnp.dtype(dtype).itemsize
    sub = _sublane(dtype)
    out_h = H - 1
    row_bytes = W_in * itemsize

    # Channel tile: take all channels at once whenever a minimal-height block
    # fits the budget -- this removes the grid reduction axis and the
    # accumulator scratch entirely (C is tiny for real TVLoss inputs).
    tc = 1
    for d in range(min(C, _MAX_CHAN_UNROLL), 0, -1):
        if C % d == 0 and d * sub * row_bytes <= _IN_BLOCK_BUDGET:
            tc = d
            break

    # Row tile: as tall as the budget allows, capped at "covers everything".
    th_full = _round_up(out_h, sub)
    th = max(sub, (_IN_BLOCK_BUDGET // (tc * row_bytes)) // sub * sub)
    th = min(th, th_full)

    # Ensure enough grid steps for both v7x TensorCores and for DMA/compute
    # overlap, even for B == 1 (per-step overhead ~0.35 us is negligible).
    nh = _cdiv(out_h, th)
    if B * nh < _MIN_PARALLEL_STEPS:
        want_nh = min(_cdiv(out_h, sub), _cdiv(_MIN_PARALLEL_STEPS, B))
        th = min(th, _round_up(_cdiv(out_h, want_nh), sub))
        nh = _cdiv(out_h, th)
    return tc, th, sub


def _tv_kernel(*refs, tc, weight, has_halo, n_csteps, out_w):
    it = iter(refs)
    x_ref = next(it)                               # (tc, th, W)
    halo_ref = next(it) if has_halo else None      # (tc, sub, W)
    o_ref = next(it)                               # (th, out_w)
    acc_ref = next(it) if n_csteps > 1 else None   # (th, W) f32

    th, W = x_ref.shape[-2], x_ref.shape[-1]

    total = None   # (th, W) f32: this grid step's channel sum (carried in regs)
    fix = None     # (1, W)  f32: corrected last row (needs the row below the tile)
    for ci in range(tc):                            # small static unroll
        xc = x_ref[ci].astype(jnp.float32)
        # shift = size-1  ==  rotate by -1:  res[k] = src[k + 1] (wrap at the end).
        down = pltpu.roll(xc, shift=th - 1, axis=0)          # x[r+1, j]
        right = pltpu.roll(xc, shift=W - 1, axis=1)          # x[r,   j+1]
        downright = pltpu.roll(down, shift=W - 1, axis=1)    # x[r+1, j+1]
        d_h = downright - right
        d_w = downright - down
        contrib = d_h * d_h + d_w * d_w
        total = contrib if total is None else total + contrib

        if has_halo:
            # Last row of the tile wrapped around; recompute just that row from
            # the halo (the x row directly below the tile).
            h0 = halo_ref[ci, 0:1, :].astype(jnp.float32)        # x[r0+th, :]
            c_last = x_ref[ci, th - 1:th, :].astype(jnp.float32)  # x[r0+th-1, :]
            hr = pltpu.roll(h0, shift=W - 1, axis=1)             # x[r0+th, j+1]
            cr = pltpu.roll(c_last, shift=W - 1, axis=1)         # x[r0+th-1, j+1]
            f_h = hr - cr
            f_w = hr - h0
            fc = f_h * f_h + f_w * f_w
            fix = fc if fix is None else fix + fc

    if has_halo:
        # One select per grid step (not per channel) to patch the last row.
        last_row = lax.broadcasted_iota(jnp.int32, (th, W), 0) == (th - 1)
        total = jnp.where(last_row, fix, total)

    if n_csteps == 1:
        if weight != 1.0:                            # static Python branch
            total = total * weight
        o_ref[...] = total[:, :out_w].astype(o_ref.dtype)
    else:
        c_step = pl.program_id(2)

        @pl.when(c_step == 0)
        def _zero():
            acc_ref[...] = jnp.zeros_like(acc_ref)

        acc_ref[...] += total                        # one RMW per grid step

        @pl.when(c_step == n_csteps - 1)
        def _store():
            res = acc_ref[...]
            if weight != 1.0:
                res = res * weight
            o_ref[...] = res[:, :out_w].astype(o_ref.dtype)


def tv_loss(x, tv_loss_weight=1.0, *, row_tile=None, chan_tile=None):
    """Total-variation loss map.  x: [B, C, H, W] -> [B, H-1, W-1]."""
    # NOTE: tv_loss_weight mirrors the nn.Module constructor attribute: a static
    # Python constant baked into the kernel (a traced weight would need SMEM).
    B, C, H, W = x.shape
    if H < 2 or W < 2:
        return jnp.zeros((B, max(H - 1, 0), max(W - 1, 0)), x.dtype)

    out_h, out_w = H - 1, W - 1
    itemsize = jnp.dtype(x.dtype).itemsize

    # Pad W only when it is not already lane-native (keeps every roll/store on
    # native (.,128) tiling).  H is never padded; the output is never sliced.
    W_in = W if W % 128 == 0 else _round_up(W, 128)
    if W_in != W:
        x = jnp.pad(x, ((0, 0), (0, 0), (0, 0), (0, W_in - W)))

    tc, th, sub = _pick_tiles(B, C, H, W_in, x.dtype)
    if row_tile is not None:
        th = int(row_tile)
    if chan_tile is not None:
        tc = int(chan_tile)
    if th <= 0 or th % sub or C % tc:
        raise ValueError(
            f"row_tile must be a positive multiple of {sub} and chan_tile must divide C")

    nh = _cdiv(out_h, th)
    n_csteps = C // tc
    # The bottom row of each tile needs the x row just below it; fetch it via a
    # tiny sublane-tile halo block.  Not needed when one tile already holds
    # x row H-1.
    has_halo = (nh > 1) or (th < H)

    kernel = functools.partial(
        _tv_kernel, tc=tc, weight=float(tv_loss_weight), has_halo=has_halo,
        n_csteps=n_csteps, out_w=out_w)

    th_blocks = th // sub           # halo H-block-index units per row tile
    h_last = (H - 1) // sub         # last in-bounds sublane block along H

    if n_csteps == 1:
        grid = (B, nh)
        x_map = lambda b, h: (b, 0, h, 0)
        halo_map = lambda b, h: (b, 0, jnp.minimum((h + 1) * th_blocks, h_last), 0)
        out_map = lambda b, h: (b, h, 0)
        semantics = ("parallel", "parallel")
        scratch = []
    else:
        grid = (B, nh, n_csteps)
        x_map = lambda b, h, c: (b, c, h, 0)
        halo_map = lambda b, h, c: (b, c, jnp.minimum((h + 1) * th_blocks, h_last), 0)
        out_map = lambda b, h, c: (b, h, 0)
        semantics = ("parallel", "parallel", "arbitrary")
        scratch = [pltpu.VMEM((th, W_in), jnp.float32)]

    in_specs = [pl.BlockSpec((None, tc, th, W_in), x_map)]
    inputs = [x]
    if has_halo:
        in_specs.append(pl.BlockSpec((None, tc, sub, W_in), halo_map))
        inputs.append(x)

    # VMEM plan: double-buffered in / halo / out blocks + accumulator + f32
    # temp headroom; floored at the default scoped limit, capped below v7x's
    # 64 MiB physical VMEM.
    in_block = tc * th * W_in * itemsize
    halo_block = tc * sub * W_in * itemsize if has_halo else 0
    out_block = th * out_w * itemsize
    f32_slab = th * W_in * 4
    vmem_bytes = (2 * (in_block + halo_block + out_block)
                  + (f32_slab if n_csteps > 1 else 0)
                  + 8 * f32_slab
                  + (2 << 20))
    vmem_limit = int(min(max(vmem_bytes, 32 << 20), 60 << 20))

    return pl.pallas_call(
        kernel,
        out_shape=jax.ShapeDtypeStruct((B, out_h, out_w), x.dtype),
        grid_spec=pltpu.PrefetchScalarGridSpec(
            num_scalar_prefetch=0,
            grid=grid,
            in_specs=in_specs,
            out_specs=pl.BlockSpec((None, th, out_w), out_map),
            scratch_shapes=scratch,
        ),
        compiler_params=pltpu.CompilerParams(
            dimension_semantics=semantics,
            vmem_limit_bytes=vmem_limit),
    )(*inputs)


def tv_loss_ref(x, tv_loss_weight=1.0):
    h_tv = jnp.square(x[:, :, 1:, :] - x[:, :, :-1, :])
    w_tv = jnp.square(x[:, :, :, 1:] - x[:, :, :, :-1])
    return tv_loss_weight * (h_tv[:, :, :, 1:] + w_tv[:, :, 1:, :]).sum(axis=1)


if __name__ == "__main__":
    # Main case (matches the module's typical small NCHW input).
    B, C, H, W = 2, 4, 16, 16
    x = jax.random.normal(jax.random.PRNGKey(0), (B, C, H, W), dtype=jnp.float32)
    out = jax.block_until_ready(tv_loss(x, tv_loss_weight=1.0))
    ref = tv_loss_ref(x, tv_loss_weight=1.0)
    assert out.shape == (B, H - 1, W - 1)
    assert jnp.allclose(out, ref, atol=1e-5, rtol=1e-5)

    # Lane-native width (no pad pass), odd height (partial last row tile with
    # OOB input rows), non-unit weight, B = 1 (parallel row split).
    x2 = jax.random.normal(jax.random.PRNGKey(1), (1, 3, 20, 128), jnp.float32)
    out2 = jax.block_until_ready(tv_loss(x2, tv_loss_weight=0.5))
    ref2 = tv_loss_ref(x2, tv_loss_weight=0.5)
    assert out2.shape == (1, 19, 127)
    assert jnp.allclose(out2, ref2, atol=1e-5, rtol=1e-5)

    # Channel-split (grid reduction + accumulator scratch) path via overrides.
    out3 = jax.block_until_ready(
        tv_loss(x, tv_loss_weight=1.0, row_tile=8, chan_tile=2))
    assert jnp.allclose(out3, ref, atol=1e-5, rtol=1e-5)

    # bf16 input: 16-row dtype-native main and halo blocks.
    x4 = jax.random.normal(
        jax.random.PRNGKey(2), (1, 3, 48, 24), jnp.float32).astype(jnp.bfloat16)
    out4 = jax.block_until_ready(tv_loss(x4, tv_loss_weight=1.0))
    ref4 = tv_loss_ref(x4.astype(jnp.float32), tv_loss_weight=1.0)
    assert out4.shape == (1, 47, 23)
    assert jnp.allclose(out4.astype(jnp.float32), ref4, atol=5e-2, rtol=5e-2)

    print("KERNEL_OK")
</pallas_src>

<mosaic_0001>
module attributes {stable_mosaic.version = 11 : i64} {
  func.func @_tv_kernel(%arg0: i32, %arg1: i32, %arg2: memref<1x4x8x128xf32, #tpu.memory_space<vmem>>, %arg3: memref<1x4x8x128xf32, #tpu.memory_space<vmem>>, %arg4: memref<1x8x15xf32, #tpu.memory_space<vmem>>) attributes {dimension_semantics = [#tpu.dimension_semantics<parallel>, #tpu.dimension_semantics<parallel>], iteration_bounds = array<i64: 2, 2>, scalar_prefetch = 0 : i64, scratch_operands = 0 : i64, tpu.core_type = #tpu.core_type<tc>, window_params = [{transform_indices = @transform_0, window_bounds = array<i64: 1, 4, 8, 128>}, {transform_indices = @transform_1, window_bounds = array<i64: 1, 4, 8, 128>}, {transform_indices = @transform_2, window_bounds = array<i64: 1, 8, 15>}]} {
    %c0 = arith.constant 0 : index
    %c0_0 = arith.constant 0 : index
    %c0_1 = arith.constant 0 : index
    %c0_2 = arith.constant 0 : index
    %0 = vector.load %arg2[%c0, %c0_0, %c0_1, %c0_2] : memref<1x4x8x128xf32, #tpu.memory_space<vmem>>, vector<1x1x8x128xf32>
    %1 = vector.shape_cast %0 : vector<1x1x8x128xf32> to vector<8x128xf32>
    %c7_i32 = arith.constant 7 : i32
    %2 = tpu.dynamic_rotate %1 by %c7_i32 dim 0 : vector<8x128xf32>, i32 -> vector<8x128xf32>
    %c127_i32 = arith.constant 127 : i32
    %3 = tpu.dynamic_rotate %1 by %c127_i32 dim 1 : vector<8x128xf32>, i32 -> vector<8x128xf32>
    %c127_i32_3 = arith.constant 127 : i32
    %4 = tpu.dynamic_rotate %2 by %c127_i32_3 dim 1 : vector<8x128xf32>, i32 -> vector<8x128xf32>
    %5 = arith.subf %4, %3 : vector<8x128xf32>
    %6 = arith.subf %4, %2 : vector<8x128xf32>
    %7 = arith.mulf %5, %5 : vector<8x128xf32>
    %8 = arith.mulf %6, %6 : vector<8x128xf32>
    %9 = arith.addf %7, %8 : vector<8x128xf32>
    %c0_4 = arith.constant 0 : index
    %c0_5 = arith.constant 0 : index
    %c0_6 = arith.constant 0 : index
    %c0_7 = arith.constant 0 : index
    %10 = vector.load %arg3[%c0_4, %c0_5, %c0_6, %c0_7] : memref<1x4x8x128xf32, #tpu.memory_space<vmem>>, vector<1x1x1x128xf32>
    %11 = vector.shape_cast %10 : vector<1x1x1x128xf32> to vector<1x128xf32>
    %c0_8 = arith.constant 0 : index
    %c0_9 = arith.constant 0 : index
    %c7 = arith.constant 7 : index
    %c0_10 = arith.constant 0 : index
    %12 = vector.load %arg2[%c0_8, %c0_9, %c7, %c0_10] : memref<1x4x8x128xf32, #tpu.memory_space<vmem>>, vector<1x1x1x128xf32>
    %13 = vector.shape_cast %12 : vector<1x1x1x128xf32> to vector<1x128xf32>
    %c127_i32_11 = arith.constant 127 : i32
    %14 = tpu.dynamic_rotate %11 by %c127_i32_11 dim 1 : vector<1x128xf32>, i32 -> vector<1x128xf32>
    %c127_i32_12 = arith.constant 127 : i32
    %15 = tpu.dynamic_rotate %13 by %c127_i32_12 dim 1 : vector<1x128xf32>, i32 -> vector<1x128xf32>
    %16 = arith.subf %14, %15 : vector<1x128xf32>
    %17 = arith.subf %14, %11 : vector<1x128xf32>
    %18 = arith.mulf %16, %16 : vector<1x128xf32>
    %19 = arith.mulf %17, %17 : vector<1x128xf32>
    %20 = arith.addf %18, %19 : vector<1x128xf32>
    %c0_13 = arith.constant 0 : index
    %c1 = arith.constant 1 : index
    %c0_14 = arith.constant 0 : index
    %c0_15 = arith.constant 0 : index
    %21 = vector.load %arg2[%c0_13, %c1, %c0_14, %c0_15] : memref<1x4x8x128xf32, #tpu.memory_space<vmem>>, vector<1x1x8x128xf32>
    %22 = vector.shape_cast %21 : vector<1x1x8x128xf32> to vector<8x128xf32>
    %c7_i32_16 = arith.constant 7 : i32
    %23 = tpu.dynamic_rotate %22 by %c7_i32_16 dim 0 : vector<8x128xf32>, i32 -> vector<8x128xf32>
    %c127_i32_17 = arith.constant 127 : i32
    %24 = tpu.dynamic_rotate %22 by %c127_i32_17 dim 1 : vector<8x128xf32>, i32 -> vector<8x128xf32>
    %c127_i32_18 = arith.constant 127 : i32
    %25 = tpu.dynamic_rotate %23 by %c127_i32_18 dim 1 : vector<8x128xf32>, i32 -> vector<8x128xf32>
    %26 = arith.subf %25, %24 : vector<8x128xf32>
    %27 = arith.subf %25, %23 : vector<8x128xf32>
    %28 = arith.mulf %26, %26 : vector<8x128xf32>
    %29 = arith.mulf %27, %27 : vector<8x128xf32>
    %30 = arith.addf %28, %29 : vector<8x128xf32>
    %31 = arith.addf %9, %30 : vector<8x128xf32>
    %c0_19 = arith.constant 0 : index
    %c1_20 = arith.constant 1 : index
    %c0_21 = arith.constant 0 : index
    %c0_22 = arith.constant 0 : index
    %32 = vector.load %arg3[%c0_19, %c1_20, %c0_21, %c0_22] : memref<1x4x8x128xf32, #tpu.memory_space<vmem>>, vector<1x1x1x128xf32>
    %33 = vector.shape_cast %32 : vector<1x1x1x128xf32> to vector<1x128xf32>
    %c0_23 = arith.constant 0 : index
    %c1_24 = arith.constant 1 : index
    %c7_25 = arith.constant 7 : index
    %c0_26 = arith.constant 0 : index
    %34 = vector.load %arg2[%c0_23, %c1_24, %c7_25, %c0_26] : memref<1x4x8x128xf32, #tpu.memory_space<vmem>>, vector<1x1x1x128xf32>
    %35 = vector.shape_cast %34 : vector<1x1x1x128xf32> to vector<1x128xf32>
    %c127_i32_27 = arith.constant 127 : i32
    %36 = tpu.dynamic_rotate %33 by %c127_i32_27 dim 1 : vector<1x128xf32>, i32 -> vector<1x128xf32>
    %c127_i32_28 = arith.constant 127 : i32
    %37 = tpu.dynamic_rotate %35 by %c127_i32_28 dim 1 : vector<1x128xf32>, i32 -> vector<1x128xf32>
    %38 = arith.subf %36, %37 : vector<1x128xf32>
    %39 = arith.subf %36, %33 : vector<1x128xf32>
    %40 = arith.mulf %38, %38 : vector<1x128xf32>
    %41 = arith.mulf %39, %39 : vector<1x128xf32>
    %42 = arith.addf %40, %41 : vector<1x128xf32>
    %43 = arith.addf %20, %42 : vector<1x128xf32>
    %c0_29 = arith.constant 0 : index
    %c2 = arith.constant 2 : index
    %c0_30 = arith.constant 0 : index
    %c0_31 = arith.constant 0 : index
    %44 = vector.load %arg2[%c0_29, %c2, %c0_30, %c0_31] : memref<1x4x8x128xf32, #tpu.memory_space<vmem>>, vector<1x1x8x128xf32>
    %45 = vector.shape_cast %44 : vector<1x1x8x128xf32> to vector<8x128xf32>
    %c7_i32_32 = arith.constant 7 : i32
    %46 = tpu.dynamic_rotate %45 by %c7_i32_32 dim 0 : vector<8x128xf32>, i32 -> vector<8x128xf32>
    %c127_i32_33 = arith.constant 127 : i32
    %47 = tpu.dynamic_rotate %45 by %c127_i32_33 dim 1 : vector<8x128xf32>, i32 -> vector<8x128xf32>
    %c127_i32_34 = arith.constant 127 : i32
    %48 = tpu.dynamic_rotate %46 by %c127_i32_34 dim 1 : vector<8x128xf32>, i32 -> vector<8x128xf32>
    %49 = arith.subf %48, %47 : vector<8x128xf32>
    %50 = arith.subf %48, %46 : vector<8x128xf32>
    %51 = arith.mulf %49, %49 : vector<8x128xf32>
    %52 = arith.mulf %50, %50 : vector<8x128xf32>
    %53 = arith.addf %51, %52 : vector<8x128xf32>
    %54 = arith.addf %31, %53 : vector<8x128xf32>
    %c0_35 = arith.constant 0 : index
    %c2_36 = arith.constant 2 : index
    %c0_37 = arith.constant 0 : index
    %c0_38 = arith.constant 0 : index
    %55 = vector.load %arg3[%c0_35, %c2_36, %c0_37, %c0_38] : memref<1x4x8x128xf32, #tpu.memory_space<vmem>>, vector<1x1x1x128xf32>
    %56 = vector.shape_cast %55 : vector<1x1x1x128xf32> to vector<1x128xf32>
    %c0_39 = arith.constant 0 : index
    %c2_40 = arith.constant 2 : index
    %c7_41 = arith.constant 7 : index
    %c0_42 = arith.constant 0 : index
    %57 = vector.load %arg2[%c0_39, %c2_40, %c7_41, %c0_42] : memref<1x4x8x128xf32, #tpu.memory_space<vmem>>, vector<1x1x1x128xf32>
    %58 = vector.shape_cast %57 : vector<1x1x1x128xf32> to vector<1x128xf32>
    %c127_i32_43 = arith.constant 127 : i32
    %59 = tpu.dynamic_rotate %56 by %c127_i32_43 dim 1 : vector<1x128xf32>, i32 -> vector<1x128xf32>
    %c127_i32_44 = arith.constant 127 : i32
    %60 = tpu.dynamic_rotate %58 by %c127_i32_44 dim 1 : vector<1x128xf32>, i32 -> vector<1x128xf32>
    %61 = arith.subf %59, %60 : vector<1x128xf32>
    %62 = arith.subf %59, %56 : vector<1x128xf32>
    %63 = arith.mulf %61, %61 : vector<1x128xf32>
    %64 = arith.mulf %62, %62 : vector<1x128xf32>
    %65 = arith.addf %63, %64 : vector<1x128xf32>
    %66 = arith.addf %43, %65 : vector<1x128xf32>
    %c0_45 = arith.constant 0 : index
    %c3 = arith.constant 3 : index
    %c0_46 = arith.constant 0 : index
    %c0_47 = arith.constant 0 : index
    %67 = vector.load %arg2[%c0_45, %c3, %c0_46, %c0_47] : memref<1x4x8x128xf32, #tpu.memory_space<vmem>>, vector<1x1x8x128xf32>
    %68 = vector.shape_cast %67 : vector<1x1x8x128xf32> to vector<8x128xf32>
    %c7_i32_48 = arith.constant 7 : i32
    %69 = tpu.dynamic_rotate %68 by %c7_i32_48 dim 0 : vector<8x128xf32>, i32 -> vector<8x128xf32>
    %c127_i32_49 = arith.constant 127 : i32
    %70 = tpu.dynamic_rotate %68 by %c127_i32_49 dim 1 : vector<8x128xf32>, i32 -> vector<8x128xf32>
    %c127_i32_50 = arith.constant 127 : i32
    %71 = tpu.dynamic_rotate %69 by %c127_i32_50 dim 1 : vector<8x128xf32>, i32 -> vector<8x128xf32>
    %72 = arith.subf %71, %70 : vector<8x128xf32>
    %73 = arith.subf %71, %69 : vector<8x128xf32>
    %74 = arith.mulf %72, %72 : vector<8x128xf32>
    %75 = arith.mulf %73, %73 : vector<8x128xf32>
    %76 = arith.addf %74, %75 : vector<8x128xf32>
    %77 = arith.addf %54, %76 : vector<8x128xf32>
    %c0_51 = arith.constant 0 : index
    %c3_52 = arith.constant 3 : index
    %c0_53 = arith.constant 0 : index
    %c0_54 = arith.constant 0 : index
    %78 = vector.load %arg3[%c0_51, %c3_52, %c0_53, %c0_54] : memref<1x4x8x128xf32, #tpu.memory_space<vmem>>, vector<1x1x1x128xf32>
    %79 = vector.shape_cast %78 : vector<1x1x1x128xf32> to vector<1x128xf32>
    %c0_55 = arith.constant 0 : index
    %c3_56 = arith.constant 3 : index
    %c7_57 = arith.constant 7 : index
    %c0_58 = arith.constant 0 : index
    %80 = vector.load %arg2[%c0_55, %c3_56, %c7_57, %c0_58] : memref<1x4x8x128xf32, #tpu.memory_space<vmem>>, vector<1x1x1x128xf32>
    %81 = vector.shape_cast %80 : vector<1x1x1x128xf32> to vector<1x128xf32>
    %c127_i32_59 = arith.constant 127 : i32
    %82 = tpu.dynamic_rotate %79 by %c127_i32_59 dim 1 : vector<1x128xf32>, i32 -> vector<1x128xf32>
    %c127_i32_60 = arith.constant 127 : i32
    %83 = tpu.dynamic_rotate %81 by %c127_i32_60 dim 1 : vector<1x128xf32>, i32 -> vector<1x128xf32>
    %84 = arith.subf %82, %83 : vector<1x128xf32>
    %85 = arith.subf %82, %79 : vector<1x128xf32>
    %86 = arith.mulf %84, %84 : vector<1x128xf32>
    %87 = arith.mulf %85, %85 : vector<1x128xf32>
    %88 = arith.addf %86, %87 : vector<1x128xf32>
    %89 = arith.addf %66, %88 : vector<1x128xf32>
    %90 = tpu.iota {dimensions = array<i32: 0>} : vector<8x128xi32>
    %c7_i32_61 = arith.constant 7 : i32
    %91 = vector.broadcast %c7_i32_61 : i32 to vector<8x128xi32>
    %92 = arith.cmpi eq, %90, %91 : vector<8x128xi32>
    %93 = vector.shape_cast %89 : vector<1x128xf32> to vector<1x128xf32>
    %94 = vector.broadcast %93 : vector<1x128xf32> to vector<8x128xf32>
    %95 = arith.select %92, %94, %77 : vector<8x128xi1>, vector<8x128xf32>
    %96 = vector.extract_strided_slice %95 {offsets = [0, 0], sizes = [8, 15], strides = [1, 1]} : vector<8x128xf32> to vector<8x15xf32>
    %c0_62 = arith.constant 0 : index
    %c0_63 = arith.constant 0 : index
    %c0_64 = arith.constant 0 : index
    %97 = vector.load %arg4[%c0_62, %c0_63, %c0_64] : memref<1x8x15xf32, #tpu.memory_space<vmem>>, vector<1x8x15xf32>
    %98 = vector.shape_cast %97 : vector<1x8x15xf32> to vector<8x15xf32>
    %99 = vector.shape_cast %96 : vector<8x15xf32> to vector<1x8x15xf32>
    tpu.vector_store %arg4[%c0_62, %c0_63, %c0_64], %99 {strides = array<i32>} : memref<1x8x15xf32, #tpu.memory_space<vmem>>, vector<1x8x15xf32>,
    return
  }
  func.func @transform_0(%arg0: i32, %arg1: i32) -> (i32, i32, i32, i32) {
    %c0_i32 = arith.constant 0 : i32
    %c0_i32_0 = arith.constant 0 : i32
    %c0_i32_1 = arith.constant 0 : i32
    return %arg0, %c0_i32, %arg1, %c0_i32_0 : i32, i32, i32, i32
  }
  func.func @transform_1(%arg0: i32, %arg1: i32) -> (i32, i32, i32, i32) {
    %c1_i32 = arith.constant 1 : i32
    %0 = arith.addi %arg1, %c1_i32 : i32
    %c1_i32_0 = arith.constant 1 : i32
    %1 = arith.muli %0, %c1_i32_0 : i32
    %c1_i32_1 = arith.constant 1 : i32
    %2 = arith.minsi %1, %c1_i32_1 : i32
    %c0_i32 = arith.constant 0 : i32
    %c0_i32_2 = arith.constant 0 : i32
    %c0_i32_3 = arith.constant 0 : i32
    return %arg0, %c0_i32, %2, %c0_i32_2 : i32, i32, i32, i32
  }
  func.func @transform_2(%arg0: i32, %arg1: i32) -> (i32, i32, i32) {
    %c0_i32 = arith.constant 0 : i32
    %c0_i32_0 = arith.constant 0 : i32
    return %arg0, %arg1, %c0_i32 : i32, i32, i32
  }
}

</mosaic_0001>

<llo_original>
// kernel: tpu_custom_call.1
$region0: #{tpu_custom_call.1}
  #allocation0 [shape = 'u32[]', space=smem, size = 0x4, offset = 0x4, fixed_abs, tag = 'smem constant byte address 0x4 - core index']
  #allocation1 [shape = 'u32[144,128]{1,0:T(1,128)}', space=vmem, size = 0x12000, scoped, tag = 'internal scratch']
  %s0 = inlined_call_operand.hbm [shape: f32[2,4,16,128], index: 0, kind: input, shape index: {}]
  %s1 = inlined_call_operand.hbm [shape: f32[2,4,16,128], index: 1, kind: input, shape index: {}]
  %s2 = inlined_call_operand.vmem [shape: f32[2,15,15], index: 2, kind: output, shape index: {}]
  %s3 = sld [smem:[#allocation0]]
  $region49: #{tpu_custom_call.1} parent=0
    _
  %s5 = ssub.s32 1, %s3
  %s6 = scalar_select 0, %s5, %s3
  $region1: #{tpu_custom_call.1} parent=0
    #allocation2 [shape = 'u8[32768]{0}', space=vmem, size = 0x8000, scoped, tag = 'input window, operand 0']
    #allocation3 [shape = 's32[2]{0}', space=sflag, size = 0x8, scoped, tag = 'scoped memory for tpu_custom_call.1']
    #allocation4 [shape = 'u8[32768]{0}', space=vmem, size = 0x8000, scoped, tag = 'input window, operand 1']
    #allocation5 [shape = 's32[2]{0}', space=sflag, size = 0x8, scoped, tag = 'scoped memory for tpu_custom_call.1']
    %7 = vsyncpa [#allocation3], 0
    %s8 = scalar_lea.sflag [#allocation3], 1
    %9 = vsyncpa %s8, 0
    %10 = vsyncpa [#allocation5], 0
    %s11 = scalar_lea.sflag [#allocation5], 1
    %12 = vsyncpa %s11, 0
    loop: start=0, step=1, limit=6
    $region2: #{tpu_custom_call.1} parent=1 // loop_pre_header
      _
    $region3: #{tpu_custom_call.1} parent=1 // loop_header
      %s14 = sphi 0, %s18
      %p15 = scmp.ge.s32.totalorder %s14, 6
      %s21 = sphi 0, %s33
      %s22 = sphi 0, %s29
      %s23 = sphi 0, %s21
      %s24 = sphi 0, %s22
      %s25 = sphi 0, %s23
      %s26 = sphi 0, %s24
      %s38 = sphi 0, %s40
      %s41 = sphi 0, %s38
      %s42 = sphi 0, %s41
      %s58 = sphi 0, %s42
      %s72 = sphi 0, %s74
      %s75 = sphi 0, %s72
      %s76 = sphi 0, %s75
      %s92 = sphi 0, %s76
      %s100 = sphi 0, %s102
      %s103 = sphi 0, %s100
      %s104 = sphi 0, %s103
      %s120 = sphi 0, %s104
    $region4: #{tpu_custom_call.1} parent=1 // loop_header_branch
      %17 = sbr.rel (%p15) target = $region8
    $region5: #{tpu_custom_call.1} parent=1 // loop_body
      %s19 = ssub.s32 %s14, 1
      %s20 = ssub.s32 %s14, 2
      %s27 = sadd.s32 1, %s22
      %p28 = scmp.ge.s32.totalorder %s27, 2
      %s29 = scalar_select %p28, 0, %s27
      %s30 = sadd.s32 1, %s21
      %s31 = scalar_select %p28, %s30, %s21
      %p32 = scmp.ge.s32.totalorder %s31, 2
      %s33 = scalar_select %p32, 0, %s31
      %s34 = ssub.s32 %s21, %s33
      %s35 = ssub.s32 %s22, %s29
      %s36 = sor.u32 %s34, %s35
      %p37 = scmp.eq.s32.totalorder %s36, 0
      %s39 = sadd.s32 %s38, 1
      %s40 = scalar_select %p37, %s38, %s39
      %p43 = pneg %p37
      %p44 = scmp.eq.s32.totalorder %s14, 3
      %p45 = por %p43, %p44
      %p46 = scmp.ne.s32.totalorder %s38, %s41
      %p47 = scmp.eq.s32.totalorder %s14, 0
      %p48 = por %p46, %p47
      %p49 = scmp.ne.s32.totalorder %s38, %s41
      %p50 = scmp.eq.s32.totalorder %s19, 3
      %p51 = por %p49, %p50
      %p52 = scmp.ne.s32.totalorder %s41, %s42
      %p53 = scmp.eq.s32.totalorder %s19, 0
      %p54 = por %p52, %p53
      %p55 = scmp.ne.s32.totalorder %s41, %s42
      %p56 = scmp.eq.s32.totalorder %s20, 3
      %p57 = por %p55, %p56
      %p59 = scmp.ne.s32.totalorder %s42, %s58
      %p60 = scmp.eq.s32.totalorder %s20, 0
      %p61 = por %p59, %p60
      %s62 = sadd.s32 %s22, 1
      %p63 = scmp.lt.s32.totalorder %s62, 1
      %s64 = scalar_select %p63, %s62, 1
      %s65 = sadd.s32 %s29, 1
      %p66 = scmp.lt.s32.totalorder %s65, 1
      %s67 = scalar_select %p66, %s65, 1
      %s68 = ssub.s32 %s21, %s33
      %s69 = ssub.s32 %s64, %s67
      %s70 = sor.u32 %s68, %s69
      %p71 = scmp.eq.s32.totalorder %s70, 0
      %s73 = sadd.s32 %s72, 1
      %s74 = scalar_select %p71, %s72, %s73
      %p77 = pneg %p71
      %p78 = scmp.eq.s32.totalorder %s14, 3
      %p79 = por %p77, %p78
      %p80 = scmp.ne.s32.totalorder %s72, %s75
      %p81 = scmp.eq.s32.totalorder %s14, 0
      %p82 = por %p80, %p81
      %p83 = scmp.ne.s32.totalorder %s72, %s75
      %p84 = scmp.eq.s32.totalorder %s19, 3
      %p85 = por %p83, %p84
      %p86 = scmp.ne.s32.totalorder %s75, %s76
      %p87 = scmp.eq.s32.totalorder %s19, 0
      %p88 = por %p86, %p87
      %p89 = scmp.ne.s32.totalorder %s75, %s76
      %p90 = scmp.eq.s32.totalorder %s20, 3
      %p91 = por %p89, %p90
      %p93 = scmp.ne.s32.totalorder %s76, %s92
      %p94 = scmp.eq.s32.totalorder %s20, 0
      %p95 = por %p93, %p94
      %s96 = ssub.s32 %s21, %s33
      %s97 = ssub.s32 %s22, %s29
      %s98 = sor.u32 %s96, %s97
      %p99 = scmp.eq.s32.totalorder %s98, 0
      %s101 = sadd.s32 %s100, 1
      %s102 = scalar_select %p99, %s100, %s101
      %p105 = pneg %p99
      %p106 = scmp.eq.s32.totalorder %s14, 3
      %p107 = por %p105, %p106
      %p108 = scmp.ne.s32.totalorder %s100, %s103
      %p109 = scmp.eq.s32.totalorder %s14, 0
      %p110 = por %p108, %p109
      %p111 = scmp.ne.s32.totalorder %s100, %s103
      %p112 = scmp.eq.s32.totalorder %s19, 3
      %p113 = por %p111, %p112
      %p114 = scmp.ne.s32.totalorder %s103, %s104
      %p115 = scmp.eq.s32.totalorder %s19, 0
      %p116 = por %p114, %p115
      %p117 = scmp.ne.s32.totalorder %s103, %s104
      %p118 = scmp.eq.s32.totalorder %s20, 3
      %p119 = por %p117, %p118
      %p121 = scmp.ne.s32.totalorder %s104, %s120
      %p122 = scmp.eq.s32.totalorder %s20, 0
      %p123 = por %p121, %p122
      %p124 = scmp.le.s32.totalorder 1, %s14
      %p125 = scmp.lt.s32.totalorder %s14, 5
      %p126 = pnand %p124, %p125
      %p127 = pneg %p126
      // Predicated region
      $region9: #{tpu_custom_call.1} parent=5 // pred_check
        _
      $region10: #{tpu_custom_call.1} parent=5 // pred_check_branch
        %129 = sbr.rel (%p126) target = $region12
      $region11: #{tpu_custom_call.1} parent=5 // pred_region
        %s130 = ssub.s32 %s14, 1
      $region12: #{tpu_custom_call.1} parent=5 // pred_fallthru
        _
      %p131 = scmp.lt.s32.totalorder %s14, 4
      // Predicated region
      $region13: #{tpu_custom_call.1} parent=5 // pred_check
        %p132 = pneg %p131
      $region14: #{tpu_custom_call.1} parent=5 // pred_check_branch
        %134 = sbr.rel (%p132) target = $region16
      $region15: #{tpu_custom_call.1} parent=5 // pred_region
        // Predicated region
        $region17: #{tpu_custom_call.1} parent=15 // pred_check
          %p135 = pneg %p48
        $region18: #{tpu_custom_call.1} parent=15 // pred_check_branch
          %137 = sbr.rel (%p135) target = $region20
        $region19: #{tpu_custom_call.1} parent=15 // pred_region
          %s138 = sand.u32 %s38, 1
          %s139 = scalar_lea.sflag [#allocation3], %s138
          %s140 = sand.u32 %s38, 1
          %s141 = smul.addr %s140, 32
          %s142 = scalar_lea.vmem [#allocation2], %s141
          %s144 = ssub.s32 512, 512
          %145 = vsyncadd %s139, %s144
          %s146 = smul.addr %s21, 8
          %s147 = sadd.s32 %s22, %s146
          %s148 = smul.addr %s147, 128
          %s149 = scalar_lea.hbm %s0, %s148
          %s150 = sshll.u32 %s142, 4
          %s151 = int_to_ptr.vmem [resolvable:$true] %s150
          %156 = dma.hbm_to_vmem [thread:$0]  %s149, 512, %s151, %s139, 256, 128, 8
        $region20: #{tpu_custom_call.1} parent=15 // pred_fallthru
          _
        // Predicated region
        $region21: #{tpu_custom_call.1} parent=15 // pred_check
          %p157 = pneg %p82
        $region22: #{tpu_custom_call.1} parent=15 // pred_check_branch
          %159 = sbr.rel (%p157) target = $region24
        $region23: #{tpu_custom_call.1} parent=15 // pred_region
          %s160 = sand.u32 %s72, 1
          %s161 = scalar_lea.sflag [#allocation5], %s160
          %s162 = sand.u32 %s72, 1
          %s163 = smul.addr %s162, 32
          %s164 = scalar_lea.vmem [#allocation4], %s163
          %s165 = sadd.s32 %s22, 1
          %p166 = scmp.lt.s32.totalorder %s165, 1
          %s167 = scalar_select %p166, %s165, 1
          %s169 = ssub.s32 512, 512
          %170 = vsyncadd %s161, %s169
          %s171 = smul.addr %s21, 8
          %s172 = sadd.s32 %s167, %s171
          %s173 = smul.addr %s172, 128
          %s174 = scalar_lea.hbm %s1, %s173
          %s175 = sshll.u32 %s164, 4
          %s176 = int_to_ptr.vmem [resolvable:$true] %s175
          %181 = dma.hbm_to_vmem [thread:$0]  %s174, 512, %s176, %s161, 256, 128, 8
        $region24: #{tpu_custom_call.1} parent=15 // pred_fallthru
          _
      $region16: #{tpu_custom_call.1} parent=5 // pred_fallthru
        _
      %p182 = scmp.le.s32.totalorder 1, %s14
      %p183 = scmp.lt.s32.totalorder %s14, 5
      %p184 = pnand %p182, %p183
      %p185 = pneg %p184
      // Predicated region
      $region25: #{tpu_custom_call.1} parent=5 // pred_check
        _
      $region26: #{tpu_custom_call.1} parent=5 // pred_check_branch
        %187 = sbr.rel (%p184) target = $region28
      $region27: #{tpu_custom_call.1} parent=5 // pred_region
        %s188 = ssub.s32 %s14, 1
        %s189 = sand.u32 %s41, 1
        %s190 = scalar_lea.sflag [#allocation3], %s189
        %s191 = sand.u32 %s41, 1
        %s192 = smul.addr %s191, 32
        %s193 = scalar_lea.vmem [#allocation2], %s192
        // Predicated region
        $region29: #{tpu_custom_call.1} parent=27 // pred_check
          %p194 = pneg %p54
        $region30: #{tpu_custom_call.1} parent=27 // pred_check_branch
          %196 = sbr.rel (%p194) target = $region32
        $region31: #{tpu_custom_call.1} parent=27 // pred_region
          %197 = dma.done %s190, 512
        $region32: #{tpu_custom_call.1} parent=27 // pred_fallthru
          _
        %s198 = sand.u32 %s75, 1
        %s199 = scalar_lea.sflag [#allocation5], %s198
        %s200 = sand.u32 %s75, 1
        %s201 = smul.addr %s200, 32
        %s202 = scalar_lea.vmem [#allocation4], %s201
        // Predicated region
        $region33: #{tpu_custom_call.1} parent=27 // pred_check
          %p203 = pneg %p88
        $region34: #{tpu_custom_call.1} parent=27 // pred_check_branch
          %205 = sbr.rel (%p203) target = $region36
        $region35: #{tpu_custom_call.1} parent=27 // pred_region
          %206 = dma.done %s199, 512
        $region36: #{tpu_custom_call.1} parent=27 // pred_fallthru
          _
        %s207 = sand.u32 %s41, 1
        %s208 = scalar_lea.sflag [#allocation3], %s207
        %s209 = sand.u32 %s41, 1
        %s210 = smul.addr %s209, 32
        %s211 = scalar_lea.vmem [#allocation2], %s210
        %p212 = pneg %p54
        %p213 = pneg %p51
        %s214 = sand.u32 %s75, 1
        %s215 = scalar_lea.sflag [#allocation5], %s214
        %s216 = sand.u32 %s75, 1
        %s217 = smul.addr %s216, 32
        %s218 = scalar_lea.vmem [#allocation4], %s217
        %p219 = pneg %p88
        %p220 = pneg %p85
        %p221 = pneg %p116
        %p222 = pneg %p113
        %p223 = scmp.lt.s32.totalorder %s23, 1
        %s224 = scalar_select %p223, %s23, 1
        %p225 = scmp.lt.s32.totalorder %s24, 1
        %s226 = scalar_select %p225, %s24, 1
        %s227 = smul.addr %s224, 2
        %s228 = sadd.s32 %s226, %s227
        %s229 = smul.addr %s228, 8
        %s230 = scalar_lea.vmem %s2, %s229
        %s231 = sadd.s32 %s24, 1
        %p232 = scmp.lt.s32.totalorder %s231, 1
        %s233 = scalar_select %p232, %s231, 1
        %p234 = scmp.lt.s32.totalorder %s23, 1
        %s235 = scalar_select %p234, %s23, 1
        %p236 = scmp.lt.s32.totalorder %s24, 1
        %s237 = scalar_select %p236, %s24, 1
        %s238 = smul.addr %s235, 2
        %s239 = sadd.s32 %s237, %s238
        %s240 = smul.addr %s239, 8
        %s241 = scalar_lea.vmem %s2, %s240
        %v242 = vld [vmem:[%s193] sm:$0xff]
        %v243 = vrot.slane %v242, 1
        %244 = vrot.lane.b32.xlu0 %v242, 127
        %v245 = vpop.permute.xlu0 %244
        %246 = vrot.lane.b32.xlu0 %v243, 127
        %v247 = vpop.permute.xlu0 %246
        %v248 = vsub.f32 %v247, %v245
        %v249 = vsub.f32 %v247, %v243
        %v250 = vmul.f32 %v248, %v248
        %v251 = vmul.f32 %v249, %v249
        %v252 = vadd.f32 %v250, %v251
        %v253 = vld [vmem:[%s202] sm:$0x1]
        %v254 = vld [vmem:[%s193 + $0x7] sm:$0x1]
        %255 = vrot.lane.b32.xlu0 %v253, 127
        %v256 = vpop.permute.xlu0 %255
        %257 = vrot.lane.b32.xlu0 %v254, 127
        %v258 = vpop.permute.xlu0 %257
        %v259 = vsub.f32 %v256, %v258
        %v260 = vsub.f32 %v256, %v253
        %v261 = vmul.f32 %v259, %v259
        %v262 = vmul.f32 %v260, %v260
        %v263 = vadd.f32 %v261, %v262
        %s264 = scalar_lea.vmem %s193, 8 [#allocation2]
        %v265 = vld [vmem:[%s264] sm:$0xff]
        %v266 = vrot.slane %v265, 1
        %267 = vrot.lane.b32.xlu0 %v265, 127
        %v268 = vpop.permute.xlu0 %267
        %269 = vrot.lane.b32.xlu0 %v266, 127
        %v270 = vpop.permute.xlu0 %269
        %v271 = vsub.f32 %v270, %v268
        %v272 = vsub.f32 %v270, %v266
        %v273 = vmul.f32 %v271, %v271
        %v274 = vmul.f32 %v272, %v272
        %v275 = vadd.f32 %v273, %v274
        %v276 = vadd.f32 %v252, %v275
        %s277 = scalar_lea.vmem %s202, 8 [#allocation4]
        %v278 = vld [vmem:[%s277] sm:$0x1]
        %v279 = vld [vmem:[%s264 + $0x7] sm:$0x1]
        %280 = vrot.lane.b32.xlu0 %v278, 127
        %v281 = vpop.permute.xlu0 %280
        %282 = vrot.lane.b32.xlu0 %v279, 127
        %v283 = vpop.permute.xlu0 %282
        %v284 = vsub.f32 %v281, %v283
        %v285 = vsub.f32 %v281, %v278
        %v286 = vmul.f32 %v284, %v284
        %v287 = vmul.f32 %v285, %v285
        %v288 = vadd.f32 %v286, %v287
        %v289 = vadd.f32 %v263, %v288
        %s290 = scalar_lea.vmem %s193, 16 [#allocation2]
        %v291 = vld [vmem:[%s290] sm:$0xff]
        %v292 = vrot.slane %v291, 1
        %293 = vrot.lane.b32.xlu0 %v291, 127
        %v294 = vpop.permute.xlu0 %293
        %295 = vrot.lane.b32.xlu0 %v292, 127
        %v296 = vpop.permute.xlu0 %295
        %v297 = vsub.f32 %v296, %v294
        %v298 = vsub.f32 %v296, %v292
        %v299 = vmul.f32 %v297, %v297
        %v300 = vmul.f32 %v298, %v298
        %v301 = vadd.f32 %v299, %v300
        %v302 = vadd.f32 %v276, %v301
        %s303 = scalar_lea.vmem %s202, 16 [#allocation4]
        %v304 = vld [vmem:[%s303] sm:$0x1]
        %v305 = vld [vmem:[%s290 + $0x7] sm:$0x1]
        %306 = vrot.lane.b32.xlu0 %v304, 127
        %v307 = vpop.permute.xlu0 %306
        %308 = vrot.lane.b32.xlu0 %v305, 127
        %v309 = vpop.permute.xlu0 %308
        %v310 = vsub.f32 %v307, %v309
        %v311 = vsub.f32 %v307, %v304
        %v312 = vmul.f32 %v310, %v310
        %v313 = vmul.f32 %v311, %v311
        %v314 = vadd.f32 %v312, %v313
        %v315 = vadd.f32 %v289, %v314
        %s316 = scalar_lea.vmem %s193, 24 [#allocation2]
        %v317 = vld [vmem:[%s316] sm:$0xff]
        %v318 = vrot.slane %v317, 1
        %319 = vrot.lane.b32.xlu0 %v317, 127
        %v320 = vpop.permute.xlu0 %319
        %321 = vrot.lane.b32.xlu0 %v318, 127
        %v322 = vpop.permute.xlu0 %321
        %v323 = vsub.f32 %v322, %v320
        %v324 = vsub.f32 %v322, %v318
        %v325 = vmul.f32 %v323, %v323
        %v326 = vmul.f32 %v324, %v324
        %v327 = vadd.f32 %v325, %v326
        %v328 = vadd.f32 %v302, %v327
        %s329 = scalar_lea.vmem %s202, 24 [#allocation4]
        %v330 = vld [vmem:[%s329] sm:$0x1]
        %v331 = vld [vmem:[%s316 + $0x7] sm:$0x1]
        %332 = vrot.lane.b32.xlu0 %v330, 127
        %v333 = vpop.permute.xlu0 %332
        %334 = vrot.lane.b32.xlu0 %v331, 127
        %v335 = vpop.permute.xlu0 %334
        %v336 = vsub.f32 %v333, %v335
        %v337 = vsub.f32 %v333, %v330
        %v338 = vmul.f32 %v336, %v336
        %v339 = vmul.f32 %v337, %v337
        %v340 = vadd.f32 %v338, %v339
        %v341 = vadd.f32 %v315, %v340
        %v342 = vlaneseq
        %v343 = vshrl.u32 %v342, 7
        %vm344 = vcmp.eq.s32.totalorder %v343, 7
        %v345 = vlaneseq
        %v346 = vshrl.u32 %v345, 7
        %v347 = vsub.s32 0, %v346
        %v348 = vrot.slane %v341, %v347
        %v349 = vsel %vm344, %v348, %v328
        %vm350 = vcmask 121856
        %351 = vst.msk [vmem:[%s241] sm:$0xff] %vm350, %v349
        %p352 = scmp.lt.s32.totalorder %s23, 1
        %s353 = scalar_select %p352, %s23, 1
        %p354 = scmp.lt.s32.totalorder %s24, 1
        %s355 = scalar_select %p354, %s24, 1
        %s356 = smul.addr %s353, 2
        %s357 = sadd.s32 %s355, %s356
        %s358 = smul.addr %s357, 8
        %s359 = scalar_lea.vmem %s2, %s358
        // Predicated region
        $region37: #{tpu_custom_call.1} parent=27 // pred_check
          %p360 = pneg %p113
        $region38: #{tpu_custom_call.1} parent=27 // pred_check_branch
          %362 = sbr.rel (%p360) target = $region40
        $region39: #{tpu_custom_call.1} parent=27 // pred_region
          _
        $region40: #{tpu_custom_call.1} parent=27 // pred_fallthru
          _
      $region28: #{tpu_custom_call.1} parent=5 // pred_fallthru
        _
      %p363 = scmp.le.s32.totalorder 2, %s14
      // Predicated region
      $region41: #{tpu_custom_call.1} parent=5 // pred_check
        %p364 = pneg %p363
      $region42: #{tpu_custom_call.1} parent=5 // pred_check_branch
        %366 = sbr.rel (%p364) target = $region44
      $region43: #{tpu_custom_call.1} parent=5 // pred_region
        %s367 = ssub.s32 %s14, 2
        // Predicated region
        $region45: #{tpu_custom_call.1} parent=43 // pred_check
          %p368 = pneg %p119
        $region46: #{tpu_custom_call.1} parent=43 // pred_check_branch
          %370 = sbr.rel (%p368) target = $region48
        $region47: #{tpu_custom_call.1} parent=43 // pred_region
          %p371 = scmp.lt.s32.totalorder %s25, 1
          %s372 = scalar_select %p371, %s25, 1
          %p373 = scmp.lt.s32.totalorder %s26, 1
          %s374 = scalar_select %p373, %s26, 1
          %s375 = smul.addr %s372, 2
          %s376 = sadd.s32 %s374, %s375
          %s377 = smul.addr %s376, 8
          %s378 = scalar_lea.vmem %s2, %s377
        $region48: #{tpu_custom_call.1} parent=43 // pred_fallthru
          _
      $region44: #{tpu_custom_call.1} parent=5 // pred_fallthru
        _
    $region6: #{tpu_custom_call.1} parent=1 // loop_footer
      %s18 = sadd.s32 1, %s14
    $region7: #{tpu_custom_call.1} parent=1 // loop_footer_branch
      %13 = sbr.rel target = $region3
    $region8: #{tpu_custom_call.1} parent=1 // loop_exit
      _
    %379 = vsyncpa [#allocation3], 1
    %s380 = scalar_lea.sflag [#allocation3], 1
    %381 = vsyncpa %s380, 1
    %382 = vsyncpa [#allocation5], 1
    %s383 = scalar_lea.sflag [#allocation5], 1
    %384 = vsyncpa %s383, 1

</llo_original>
